<compile_context>
chip_gen: v6e
topology: v6e:2x2x1
jax: 0.10.0
libtpu: 0.0.40
codegen_flags: <defaults>
</compile_context>

<pallas_src>
import functools

import numpy as np
import jax
import jax.numpy as jnp
from jax.experimental import pallas as pl
from jax.experimental.pallas import tpu as pltpu


MEL_FLOOR = 1e-10
POW_FLOOR = 1e-10


def _round_up(x: int, m: int) -> int:
    return ((x + m - 1) // m) * m


# ----------------------------------------------------------------------------
# librosa-compatible slaney mel filterbank (numpy, deterministic)
# ----------------------------------------------------------------------------
def _hz_to_mel(freqs):
    freqs = np.asarray(freqs, dtype=np.float64)
    f_min, f_sp = 0.0, 200.0 / 3.0
    mels = (freqs - f_min) / f_sp
    min_log_hz = 1000.0
    min_log_mel = (min_log_hz - f_min) / f_sp
    logstep = np.log(6.4) / 27.0
    log_t = freqs >= min_log_hz
    safe = np.maximum(freqs, 1e-12)
    mels = np.where(log_t, min_log_mel + np.log(safe / min_log_hz) / logstep, mels)
    return mels


def _mel_to_hz(mels):
    mels = np.asarray(mels, dtype=np.float64)
    f_min, f_sp = 0.0, 200.0 / 3.0
    freqs = f_min + f_sp * mels
    min_log_hz = 1000.0
    min_log_mel = (min_log_hz - f_min) / f_sp
    logstep = np.log(6.4) / 27.0
    log_t = mels >= min_log_mel
    freqs = np.where(log_t, min_log_hz * np.exp(logstep * (mels - min_log_mel)), freqs)
    return freqs


def mel_filterbank(sr, n_fft, n_mels, fmin, fmax):
    """Equivalent of librosa.filters.mel(sr, n_fft, n_mels, fmin, fmax) (slaney norm)."""
    n_freq = 1 + n_fft // 2
    fftfreqs = np.fft.rfftfreq(n=n_fft, d=1.0 / sr)                     # (n_freq,)
    mel_pts = np.linspace(_hz_to_mel(fmin), _hz_to_mel(fmax), n_mels + 2)
    mel_f = _mel_to_hz(mel_pts)                                         # (n_mels+2,)
    fdiff = np.diff(mel_f)
    ramps = mel_f[:, None] - fftfreqs[None, :]                          # (n_mels+2, n_freq)
    weights = np.zeros((n_mels, n_freq), dtype=np.float64)
    for i in range(n_mels):
        lower = -ramps[i] / fdiff[i]
        upper = ramps[i + 2] / fdiff[i + 1]
        weights[i] = np.maximum(0.0, np.minimum(lower, upper))
    enorm = 2.0 / (mel_f[2:n_mels + 2] - mel_f[:n_mels])                # slaney norm
    weights *= enorm[:, None]
    return weights.astype(np.float32)                                    # (n_mels, n_freq)


# ----------------------------------------------------------------------------
# Pallas kernel: frames -> log-mel
# ----------------------------------------------------------------------------
def logmel_kernel(frames_ref, w_ref, h_ref, out_ref, *, n_freq_k):
    # frames_ref: (tm, n_fft)              window already fused into W
    # w_ref:      (n_fft, 2*n_freq_k)      [ wr | wi ] fused DFT matrices
    # h_ref:      (n_freq_k, n_mels_pad)   mel filterbank (transposed, zero-padded)
    # out_ref:    (tm, n_mels_pad)
    f = frames_ref[...]
    reim = jnp.dot(f, w_ref[...], preferred_element_type=jnp.float32)
    re = reim[:, :n_freq_k]                      # lane-aligned slice (n_freq_k % 128 == 0)
    im = reim[:, n_freq_k:]
    mag = jnp.sqrt(jnp.maximum(re * re + im * im, POW_FLOOR))   # |STFT|
    mel = jnp.dot(mag, h_ref[...], preferred_element_type=jnp.float32)
    out_ref[...] = jnp.log10(jnp.maximum(mel, MEL_FLOOR))


def log_mel_fbank(x, *, sampling_freq, n_fft, win_length, hop_length,
                  n_filterbank, low_freq, high_freq, tm=512):
    """x: (B, T) float32 raw wave -> (B, T', n_filterbank) log-mel, plus out_lengths."""
    B, T = x.shape
    n_freq = n_fft // 2 + 1

    # --- deterministic "parameters" (window, DFT matrices, mel filters) -------
    n = np.arange(win_length, dtype=np.float64)
    hann = 0.5 - 0.5 * np.cos(2.0 * np.pi * n / win_length)             # periodic hann
    w_full = np.zeros(n_fft, dtype=np.float64)
    lpad = (n_fft - win_length) // 2
    w_full[lpad:lpad + win_length] = hann                               # torch.stft centers the window

    # Mel filterbank (n_mels, n_freq); drop the Nyquist bin if (and only if) its
    # mel weights are exactly zero -> frequency axis becomes a clean 128 lanes.
    H = mel_filterbank(sampling_freq, n_fft, n_filterbank, low_freq, high_freq)
    if np.all(H[:, -1] == 0.0):
        n_freq_used = n_freq - 1                                        # e.g. 128 for n_fft=256
    else:
        n_freq_used = n_freq
    n_freq_k = _round_up(n_freq_used, 128)                              # lane-aligned freq width
    n_mels_pad = _round_up(n_filterbank, 128)                           # lane-dense output width

    nn = np.arange(n_fft, dtype=np.float64)[:, None]
    kk = np.arange(n_freq_used, dtype=np.float64)[None, :]
    ang = 2.0 * np.pi * nn * kk / n_fft
    wr = w_full[:, None] * np.cos(ang)                                  # (n_fft, n_freq_used)
    wi = -w_full[:, None] * np.sin(ang)                                 # sign irrelevant (squared)

    # Fused [ wr | wi ] -> single (n_fft, 2*n_freq_k) MXU matmul; zero-padded
    # frequency columns contribute nothing (their mel weights below are zero).
    W = np.zeros((n_fft, 2 * n_freq_k), dtype=np.float32)
    W[:, :n_freq_used] = wr
    W[:, n_freq_k:n_freq_k + n_freq_used] = wi

    # Mel filterbank transposed + zero-padded to (n_freq_k, n_mels_pad).
    Hp = np.zeros((n_freq_k, n_mels_pad), dtype=np.float32)
    Hp[:n_freq_used, :n_filterbank] = H[:, :n_freq_used].T

    w_j = jnp.asarray(W)
    h_j = jnp.asarray(Hp)

    # --- glue: center (reflect) pad + framing ---------------------------------
    pad = n_fft // 2
    x_pad = jnp.pad(x, ((0, 0), (pad, pad)), mode="reflect")
    Tp = 1 + (T + 2 * pad - n_fft) // hop_length                        # number of frames
    idx = jnp.arange(Tp)[:, None] * hop_length + jnp.arange(n_fft)[None, :]
    frames = x_pad[:, idx]                                              # (B, Tp, n_fft)
    frames = frames.reshape(B * Tp, n_fft).astype(jnp.float32)

    # --- row tiling: big tiles for MXU utilization, but keep >= 2 grid steps ---
    M = B * Tp
    tm_eff = min(tm, max(8, _round_up((M + 1) // 2, 8)))                # multiple of 8 (f32 sublane)
    M_pad = _round_up(M, tm_eff)
    if M_pad != M:
        frames = jnp.pad(frames, ((0, M_pad - M), (0, 0)))              # zero rows: safe (clamped)
    grid = (M_pad // tm_eff,)

    # --- cost estimate (helps XLA schedule the surrounding glue) --------------
    flops = (2 * M_pad * n_fft * (2 * n_freq_k)          # DFT matmul
             + 2 * M_pad * n_freq_k * n_mels_pad         # mel matmul
             + 5 * M_pad * n_freq_k)                     # power/clamp elementwise
    transcendentals = M_pad * (n_freq_k + n_mels_pad)    # sqrt + log10
    bytes_accessed = 4 * (M_pad * n_fft + n_fft * 2 * n_freq_k
                          + n_freq_k * n_mels_pad + M_pad * n_mels_pad)
    cost = pl.CostEstimate(flops=flops, transcendentals=transcendentals,
                           bytes_accessed=bytes_accessed)

    # --- Pallas call -----------------------------------------------------------
    kernel = functools.partial(logmel_kernel, n_freq_k=n_freq_k)
    out = pl.pallas_call(
        kernel,
        out_shape=jax.ShapeDtypeStruct((M_pad, n_mels_pad), jnp.float32),
        grid=grid,
        in_specs=[
            pl.BlockSpec((tm_eff, n_fft), lambda i: (i, 0)),
            pl.BlockSpec((n_fft, 2 * n_freq_k), lambda i: (0, 0)),
            pl.BlockSpec((n_freq_k, n_mels_pad), lambda i: (0, 0)),
        ],
        out_specs=pl.BlockSpec((tm_eff, n_mels_pad), lambda i: (i, 0)),
        compiler_params=pltpu.CompilerParams(
            dimension_semantics=("parallel",)),
        cost_estimate=cost,
    )(frames, w_j, h_j)

    out = out[:M, :n_filterbank].reshape(B, Tp, n_filterbank)

    # out_lengths semantics from PowerSpectrum (center=True)
    x_lengths = jnp.full((B,), T, dtype=jnp.int32)
    out_lengths = (x_lengths + 2 * (n_fft // 2) - n_fft) // hop_length + 1
    return out, out_lengths


# ----------------------------------------------------------------------------
# Pure-JAX reference (same math, no Pallas) for a sanity check
# ----------------------------------------------------------------------------
def _reference(x, **cfg):
    sampling_freq = cfg["sampling_freq"]; n_fft = cfg["n_fft"]
    win_length = cfg["win_length"]; hop_length = cfg["hop_length"]
    n_filterbank = cfg["n_filterbank"]; low_freq = cfg["low_freq"]; high_freq = cfg["high_freq"]
    B, T = x.shape
    n = np.arange(win_length, dtype=np.float64)
    hann = 0.5 - 0.5 * np.cos(2.0 * np.pi * n / win_length)
    w_full = np.zeros(n_fft)
    w_full[(n_fft - win_length) // 2:(n_fft - win_length) // 2 + win_length] = hann
    pad = n_fft // 2
    x_pad = jnp.pad(x, ((0, 0), (pad, pad)), mode="reflect")
    Tp = 1 + (T + 2 * pad - n_fft) // hop_length
    idx = jnp.arange(Tp)[:, None] * hop_length + jnp.arange(n_fft)[None, :]
    frames = x_pad[:, idx] * jnp.asarray(w_full, dtype=jnp.float32)[None, None, :]
    spec = jnp.fft.rfft(frames, n=n_fft, axis=-1)
    mag = jnp.sqrt(jnp.maximum(jnp.real(spec) ** 2 + jnp.imag(spec) ** 2, POW_FLOOR))
    H = jnp.asarray(mel_filterbank(sampling_freq, n_fft, n_filterbank, low_freq, high_freq).T)
    mel = jnp.maximum(mag @ H, MEL_FLOOR)
    return jnp.log10(mel)


if __name__ == "__main__":
    # Small config consistent with the module (scaled-down n_fft / frame sizes).
    cfg = dict(sampling_freq=16000, n_fft=256, win_length=192, hop_length=128,
               n_filterbank=80, low_freq=80, high_freq=7600)

    key = jax.random.PRNGKey(0)
    B, T = 2, 2048
    x = jax.random.normal(key, (B, T), dtype=jnp.float32)

    out, out_lengths = log_mel_fbank(x, **cfg)
    out = jax.block_until_ready(out)

    ref = jax.block_until_ready(_reference(x, **cfg))
    assert out.shape == ref.shape == (B, 1 + T // cfg["hop_length"], cfg["n_filterbank"])
    np.testing.assert_allclose(np.asarray(out), np.asarray(ref), rtol=2e-4, atol=2e-4)

    print("KERNEL_OK")
</pallas_src>

<mosaic_0001>
module attributes {stable_mosaic.version = 11 : i64} {
  func.func @logmel_kernel(%arg0: i32, %arg1: memref<24x256xf32, #tpu.memory_space<vmem>>, %arg2: memref<256x256xf32, #tpu.memory_space<vmem>>, %arg3: memref<128x128xf32, #tpu.memory_space<vmem>>, %arg4: memref<24x128xf32, #tpu.memory_space<vmem>>) attributes {dimension_semantics = [#tpu.dimension_semantics<parallel>], iteration_bounds = array<i64: 2>, scalar_prefetch = 0 : i64, scratch_operands = 0 : i64, tpu.core_type = #tpu.core_type<tc>, window_params = [{transform_indices = @transform_0, window_bounds = array<i64: 24, 256>}, {pipeline_mode = #tpu.pipeline_mode<synchronous>, transform_indices = @transform_1, window_bounds = array<i64: 256, 256>}, {pipeline_mode = #tpu.pipeline_mode<synchronous>, transform_indices = @transform_2, window_bounds = array<i64: 128, 128>}, {transform_indices = @transform_3, window_bounds = array<i64: 24, 128>}]} {
    %c0 = arith.constant 0 : index
    %c0_0 = arith.constant 0 : index
    %0 = vector.load %arg1[%c0, %c0_0] : memref<24x256xf32, #tpu.memory_space<vmem>>, vector<24x256xf32>
    %c0_1 = arith.constant 0 : index
    %c0_2 = arith.constant 0 : index
    %1 = vector.load %arg2[%c0_1, %c0_2] : memref<256x256xf32, #tpu.memory_space<vmem>>, vector<256x256xf32>
    %cst = arith.constant dense<0.000000e+00> : vector<24x256xf32>
    %2 = tpu.matmul %0, %1, %cst {dimension_numbers = #tpu.dot_dimension_numbers<[1], [0], [0], [1], [0, 0, 1, 1], [], []>} : vector<24x256xf32>, vector<256x256xf32>, vector<24x256xf32> -> vector<24x256xf32>
    %3 = vector.extract_strided_slice %2 {offsets = [0, 0], sizes = [24, 128], strides = [1, 1]} : vector<24x256xf32> to vector<24x128xf32>
    %4 = vector.extract_strided_slice %2 {offsets = [0, 128], sizes = [24, 128], strides = [1, 1]} : vector<24x256xf32> to vector<24x128xf32>
    %5 = arith.mulf %3, %3 : vector<24x128xf32>
    %6 = arith.mulf %4, %4 : vector<24x128xf32>
    %7 = arith.addf %5, %6 : vector<24x128xf32>
    %cst_3 = arith.constant 1.000000e-10 : f32
    %8 = vector.broadcast %cst_3 : f32 to vector<24x128xf32>
    %9 = arith.maximumf %7, %8 : vector<24x128xf32>
    %10 = math.sqrt %9 : vector<24x128xf32>
    %c0_4 = arith.constant 0 : index
    %c0_5 = arith.constant 0 : index
    %11 = vector.load %arg3[%c0_4, %c0_5] : memref<128x128xf32, #tpu.memory_space<vmem>>, vector<128x128xf32>
    %cst_6 = arith.constant dense<0.000000e+00> : vector<24x128xf32>
    %12 = tpu.matmul %10, %11, %cst_6 {dimension_numbers = #tpu.dot_dimension_numbers<[1], [0], [0], [1], [0, 0, 1, 1], [], []>} : vector<24x128xf32>, vector<128x128xf32>, vector<24x128xf32> -> vector<24x128xf32>
    %cst_7 = arith.constant 1.000000e-10 : f32
    %13 = vector.broadcast %cst_7 : f32 to vector<24x128xf32>
    %14 = arith.maximumf %12, %13 : vector<24x128xf32>
    %15 = math.log %14 : vector<24x128xf32>
    %cst_8 = arith.constant 0.434294492 : f32
    %16 = vector.broadcast %cst_8 : f32 to vector<24x128xf32>
    %17 = arith.mulf %15, %16 : vector<24x128xf32>
    %c0_9 = arith.constant 0 : index
    %c0_10 = arith.constant 0 : index
    %18 = vector.load %arg4[%c0_9, %c0_10] : memref<24x128xf32, #tpu.memory_space<vmem>>, vector<24x128xf32>
    tpu.vector_store %arg4[%c0_9, %c0_10], %17 {strides = array<i32>} : memref<24x128xf32, #tpu.memory_space<vmem>>, vector<24x128xf32>,
    return
  }
  func.func @transform_0(%arg0: i32) -> (i32, i32) {
    %c0_i32 = arith.constant 0 : i32
    %c0_i32_0 = arith.constant 0 : i32
    return %arg0, %c0_i32 : i32, i32
  }
  func.func @transform_1(%arg0: i32) -> (i32, i32) {
    %c0_i32 = arith.constant 0 : i32
    %c0_i32_0 = arith.constant 0 : i32
    %c0_i32_1 = arith.constant 0 : i32
    return %c0_i32, %c0_i32_0 : i32, i32
  }
  func.func @transform_2(%arg0: i32) -> (i32, i32) {
    %c0_i32 = arith.constant 0 : i32
    %c0_i32_0 = arith.constant 0 : i32
    %c0_i32_1 = arith.constant 0 : i32
    return %c0_i32, %c0_i32_0 : i32, i32
  }
  func.func @transform_3(%arg0: i32) -> (i32, i32) {
    %c0_i32 = arith.constant 0 : i32
    %c0_i32_0 = arith.constant 0 : i32
    return %arg0, %c0_i32 : i32, i32
  }
}

</mosaic_0001>

<llo_original>
// kernel: tpu_custom_call.1
$region0: #{tpu_custom_call.1}
  #allocation0 [shape = 'u32[]', space=smem, size = 0x4, offset = 0x4, fixed_abs, tag = 'smem constant byte address 0x4 - core index']
  #allocation1 [shape = 'u32[144,128]{1,0:T(1,128)}', space=vmem, size = 0x12000, scoped, tag = 'internal scratch']
  %s0 = inlined_call_operand.hbm [shape: f32[48,256], index: 0, kind: input, shape index: {}]
  %s1 = inlined_call_operand.hbm [shape: f32[256,256], index: 1, kind: input, shape index: {}]
  %s2 = inlined_call_operand.hbm [shape: f32[128,128], index: 2, kind: input, shape index: {}]
  %s3 = inlined_call_operand.hbm [shape: f32[48,128], index: 3, kind: output, shape index: {}]
  %s4 = sld [smem:[#allocation0]]
  $region57: #{tpu_custom_call.1} parent=0
    _
  %s6 = ssub.s32 1, %s4
  %s7 = scalar_select 0, %s6, %s4
  $region1: #{tpu_custom_call.1} parent=0
    #allocation2 [shape = 'u8[49152]{0}', space=vmem, size = 0xc000, scoped, tag = 'input window, operand 0']
    #allocation3 [shape = 's32[2]{0}', space=sflag, size = 0x8, scoped, tag = 'scoped memory for tpu_custom_call.1']
    #allocation4 [shape = 's32[2]{0}', space=sflag, size = 0x8, scoped, tag = 'scoped memory for tpu_custom_call.1']
    #allocation5 [shape = 'u8[262144]{0}', space=vmem, size = 0x40000, scoped, tag = 'input window, operand 1, single buffered']
    #allocation6 [shape = 's32[1]{0}', space=sflag, size = 0x4, scoped, tag = 'scoped memory for tpu_custom_call.1']
    #allocation7 [shape = 'u8[65536]{0}', space=vmem, size = 0x10000, scoped, tag = 'input window, operand 2, single buffered']
    #allocation8 [shape = 'u8[24576]{0}', space=vmem, size = 0x6000, scoped, tag = 'output window, operand 0']
    %8 = vsyncpa [#allocation3], 0
    %s9 = scalar_lea.sflag [#allocation3], 1
    %10 = vsyncpa %s9, 0
    %11 = vsyncpa [#allocation6], 0
    %12 = vsyncpa [#allocation4], 0
    %s13 = scalar_lea.sflag [#allocation4], 1
    %14 = vsyncpa %s13, 0
    loop: start=0, step=1, limit=4
    $region2: #{tpu_custom_call.1} parent=1 // loop_pre_header
      _
    $region3: #{tpu_custom_call.1} parent=1 // loop_header
      %s16 = sphi 0, %s20
      %p17 = scmp.ge.s32.totalorder %s16, 4
      %s26 = sphi 0, %s28
      %s29 = sphi 0, %s26
      %s30 = sphi 0, %s29
      %s46 = sphi 0, %s30
      %s50 = sphi 0, %s50
      %s52 = sphi 0, %s50
      %s53 = sphi 0, %s52
      %s67 = sphi 0, %s53
      %s71 = sphi 0, %s71
      %s73 = sphi 0, %s71
      %s74 = sphi 0, %s73
      %s88 = sphi 0, %s74
      %s94 = sphi 0, %s96
      %s97 = sphi 0, %s94
      %s98 = sphi 0, %s97
      %s114 = sphi 0, %s98
    $region4: #{tpu_custom_call.1} parent=1 // loop_header_branch
      %19 = sbr.rel (%p17) target = $region8
    $region5: #{tpu_custom_call.1} parent=1 // loop_body
      %s21 = ssub.s32 %s16, 1
      %s22 = ssub.s32 %s16, 2
      %s23 = sadd.s32 %s16, 1
      %s24 = ssub.s32 %s16, %s23
      %p25 = scmp.eq.s32.totalorder %s24, 0
      %s27 = sadd.s32 %s26, 1
      %s28 = scalar_select %p25, %s26, %s27
      %p31 = pneg %p25
      %p32 = scmp.eq.s32.totalorder %s16, 1
      %p33 = por %p31, %p32
      %p34 = scmp.ne.s32.totalorder %s26, %s29
      %p35 = scmp.eq.s32.totalorder %s16, 0
      %p36 = por %p34, %p35
      %p37 = scmp.ne.s32.totalorder %s26, %s29
      %p38 = scmp.eq.s32.totalorder %s21, 1
      %p39 = por %p37, %p38
      %p40 = scmp.ne.s32.totalorder %s29, %s30
      %p41 = scmp.eq.s32.totalorder %s21, 0
      %p42 = por %p40, %p41
      %p43 = scmp.ne.s32.totalorder %s29, %s30
      %p44 = scmp.eq.s32.totalorder %s22, 1
      %p45 = por %p43, %p44
      %p47 = scmp.ne.s32.totalorder %s30, %s46
      %p48 = scmp.eq.s32.totalorder %s22, 0
      %p49 = por %p47, %p48
      %s51 = sadd.s32 %s50, 1
      %p54 = scmp.eq.s32.totalorder %s16, 1
      %p55 = scmp.ne.s32.totalorder %s50, %s52
      %p56 = scmp.eq.s32.totalorder %s16, 0
      %p57 = por %p55, %p56
      %p58 = scmp.ne.s32.totalorder %s50, %s52
      %p59 = scmp.eq.s32.totalorder %s21, 1
      %p60 = por %p58, %p59
      %p61 = scmp.ne.s32.totalorder %s52, %s53
      %p62 = scmp.eq.s32.totalorder %s21, 0
      %p63 = por %p61, %p62
      %p64 = scmp.ne.s32.totalorder %s52, %s53
      %p65 = scmp.eq.s32.totalorder %s22, 1
      %p66 = por %p64, %p65
      %p68 = scmp.ne.s32.totalorder %s53, %s67
      %p69 = scmp.eq.s32.totalorder %s22, 0
      %p70 = por %p68, %p69
      %s72 = sadd.s32 %s71, 1
      %p75 = scmp.eq.s32.totalorder %s16, 1
      %p76 = scmp.ne.s32.totalorder %s71, %s73
      %p77 = scmp.eq.s32.totalorder %s16, 0
      %p78 = por %p76, %p77
      %p79 = scmp.ne.s32.totalorder %s71, %s73
      %p80 = scmp.eq.s32.totalorder %s21, 1
      %p81 = por %p79, %p80
      %p82 = scmp.ne.s32.totalorder %s73, %s74
      %p83 = scmp.eq.s32.totalorder %s21, 0
      %p84 = por %p82, %p83
      %p85 = scmp.ne.s32.totalorder %s73, %s74
      %p86 = scmp.eq.s32.totalorder %s22, 1
      %p87 = por %p85, %p86
      %p89 = scmp.ne.s32.totalorder %s74, %s88
      %p90 = scmp.eq.s32.totalorder %s22, 0
      %p91 = por %p89, %p90
      %s92 = ssub.s32 %s16, %s23
      %p93 = scmp.eq.s32.totalorder %s92, 0
      %s95 = sadd.s32 %s94, 1
      %s96 = scalar_select %p93, %s94, %s95
      %p99 = pneg %p93
      %p100 = scmp.eq.s32.totalorder %s16, 1
      %p101 = por %p99, %p100
      %p102 = scmp.ne.s32.totalorder %s94, %s97
      %p103 = scmp.eq.s32.totalorder %s16, 0
      %p104 = por %p102, %p103
      %p105 = scmp.ne.s32.totalorder %s94, %s97
      %p106 = scmp.eq.s32.totalorder %s21, 1
      %p107 = por %p105, %p106
      %p108 = scmp.ne.s32.totalorder %s97, %s98
      %p109 = scmp.eq.s32.totalorder %s21, 0
      %p110 = por %p108, %p109
      %p111 = scmp.ne.s32.totalorder %s97, %s98
      %p112 = scmp.eq.s32.totalorder %s22, 1
      %p113 = por %p111, %p112
      %p115 = scmp.ne.s32.totalorder %s98, %s114
      %p116 = scmp.eq.s32.totalorder %s22, 0
      %p117 = por %p115, %p116
      %p118 = scmp.le.s32.totalorder 1, %s16
      %p119 = scmp.lt.s32.totalorder %s16, 3
      %p120 = pnand %p118, %p119
      %p121 = pneg %p120
      // Predicated region
      $region9: #{tpu_custom_call.1} parent=5 // pred_check
        _
      $region10: #{tpu_custom_call.1} parent=5 // pred_check_branch
        %123 = sbr.rel (%p120) target = $region12
      $region11: #{tpu_custom_call.1} parent=5 // pred_region
        %s124 = ssub.s32 %s16, 1
        // Predicated region
        $region13: #{tpu_custom_call.1} parent=11 // pred_check
          %p125 = pneg %p63
        $region14: #{tpu_custom_call.1} parent=11 // pred_check_branch
          %127 = sbr.rel (%p125) target = $region16
        $region15: #{tpu_custom_call.1} parent=11 // pred_region
          %s129 = ssub.s32 8192, 8192
          %130 = vsyncadd [#allocation6], %s129
          %s131 = sshll.u32 [#allocation5], 4
          %s132 = int_to_ptr.vmem [resolvable:$true] %s131
          %137 = dma.hbm_to_vmem [thread:$0]  %s1, 8192, %s132, [#allocation6], 256, 256, 16
        $region16: #{tpu_custom_call.1} parent=11 // pred_fallthru
          _
        // Predicated region
        $region17: #{tpu_custom_call.1} parent=11 // pred_check
          %p138 = pneg %p84
        $region18: #{tpu_custom_call.1} parent=11 // pred_check_branch
          %140 = sbr.rel (%p138) target = $region20
        $region19: #{tpu_custom_call.1} parent=11 // pred_region
          %s142 = ssub.s32 2048, 2048
          %143 = vsyncadd [#allocation6], %s142
          %s144 = sshll.u32 [#allocation7], 4
          %s145 = int_to_ptr.vmem [resolvable:$true] %s144
          %150 = dma.hbm_to_vmem [thread:$0]  %s2, 2048, %s145, [#allocation6], 128, 128, 8
        $region20: #{tpu_custom_call.1} parent=11 // pred_fallthru
          _
      $region12: #{tpu_custom_call.1} parent=5 // pred_fallthru
        _
      %p151 = scmp.lt.s32.totalorder %s16, 2
      // Predicated region
      $region21: #{tpu_custom_call.1} parent=5 // pred_check
        %p152 = pneg %p151
      $region22: #{tpu_custom_call.1} parent=5 // pred_check_branch
        %154 = sbr.rel (%p152) target = $region24
      $region23: #{tpu_custom_call.1} parent=5 // pred_region
        // Predicated region
        $region25: #{tpu_custom_call.1} parent=23 // pred_check
          %p155 = pneg %p36
        $region26: #{tpu_custom_call.1} parent=23 // pred_check_branch
          %157 = sbr.rel (%p155) target = $region28
        $region27: #{tpu_custom_call.1} parent=23 // pred_region
          %s158 = sand.u32 %s26, 1
          %s159 = scalar_lea.sflag [#allocation3], %s158
          %s160 = sand.u32 %s26, 1
          %s161 = smul.addr %s160, 48
          %s162 = scalar_lea.vmem [#allocation2], %s161
          %s163 = smul.u32 3, %s16
          %s165 = ssub.s32 768, 768
          %166 = vsyncadd %s159, %s165
          %s167 = smul.addr %s163, 2
          %s168 = smul.addr %s167, 128
          %s169 = scalar_lea.hbm %s0, %s168
          %s170 = sshll.u32 %s162, 4
          %s171 = int_to_ptr.vmem [resolvable:$true] %s170
          %176 = dma.hbm_to_vmem [thread:$0]  %s169, 768, %s171, %s159, 256, 256, 16
        $region28: #{tpu_custom_call.1} parent=23 // pred_fallthru
          _
      $region24: #{tpu_custom_call.1} parent=5 // pred_fallthru
        _
      %p177 = scmp.le.s32.totalorder 1, %s16
      %p178 = scmp.lt.s32.totalorder %s16, 3
      %p179 = pnand %p177, %p178
      %p180 = pneg %p179
      // Predicated region
      $region29: #{tpu_custom_call.1} parent=5 // pred_check
        _
      $region30: #{tpu_custom_call.1} parent=5 // pred_check_branch
        %182 = sbr.rel (%p179) target = $region32
      $region31: #{tpu_custom_call.1} parent=5 // pred_region
        %s183 = ssub.s32 %s16, 1
        %s184 = sand.u32 %s29, 1
        %s185 = scalar_lea.sflag [#allocation3], %s184
        %s186 = sand.u32 %s29, 1
        %s187 = smul.addr %s186, 48
        %s188 = scalar_lea.vmem [#allocation2], %s187
        // Predicated region
        $region33: #{tpu_custom_call.1} parent=31 // pred_check
          %p189 = pneg %p42
        $region34: #{tpu_custom_call.1} parent=31 // pred_check_branch
          %191 = sbr.rel (%p189) target = $region36
        $region35: #{tpu_custom_call.1} parent=31 // pred_region
          %192 = dma.done %s185, 768
        $region36: #{tpu_custom_call.1} parent=31 // pred_fallthru
          _
        // Predicated region
        $region37: #{tpu_custom_call.1} parent=31 // pred_check
          %p193 = pneg %p63
        $region38: #{tpu_custom_call.1} parent=31 // pred_check_branch
          %195 = sbr.rel (%p193) target = $region40
        $region39: #{tpu_custom_call.1} parent=31 // pred_region
          %196 = dma.done [#allocation6], 8192
        $region40: #{tpu_custom_call.1} parent=31 // pred_fallthru
          _
        // Predicated region
        $region41: #{tpu_custom_call.1} parent=31 // pred_check
          %p197 = pneg %p84
        $region42: #{tpu_custom_call.1} parent=31 // pred_check_branch
          %199 = sbr.rel (%p197) target = $region44
        $region43: #{tpu_custom_call.1} parent=31 // pred_region
          %200 = dma.done [#allocation6], 2048
        $region44: #{tpu_custom_call.1} parent=31 // pred_fallthru
          _
        %s201 = sand.u32 %s29, 1
        %s202 = scalar_lea.sflag [#allocation3], %s201
        %s203 = sand.u32 %s29, 1
        %s204 = smul.addr %s203, 48
        %s205 = scalar_lea.vmem [#allocation2], %s204
        %p206 = pneg %p42
        %p207 = pneg %p39
        %p208 = pneg %p63
        %p209 = pneg %p60
        %p210 = pneg %p84
        %p211 = pneg %p81
        %p212 = pneg %p110
        %p213 = pneg %p107
        %s214 = sand.u32 %s97, 1
        %s215 = scalar_lea.sflag [#allocation4], %s214
        %s216 = sand.u32 %s97, 1
        %s217 = smul.addr %s216, 24
        %s218 = scalar_lea.vmem [#allocation8], %s217
        %s219 = smul.u32 3, %s21
        %s220 = smul.u32 3, %s21
        %v221 = vld [vmem:[%s188] sm:$0xff]
        %v222 = vld [vmem:[%s188 + $0x8] sm:$0xff]
        %v223 = vld [vmem:[%s188 + $0x10] sm:$0xff]
        %v224 = vld [vmem:[%s188 + $0x18] sm:$0xff]
        %v225 = vld [vmem:[%s188 + $0x20] sm:$0xff]
        %v226 = vld [vmem:[%s188 + $0x28] sm:$0xff]
        %v227 = vld [vmem:[#allocation5] sm:$0xff]
        %v228 = vld [vmem:[#allocation5 + $0x8] sm:$0xff]
        %v229 = vld [vmem:[#allocation5 + $0x10] sm:$0xff]
        %v230 = vld [vmem:[#allocation5 + $0x18] sm:$0xff]
        %v231 = vld [vmem:[#allocation5 + $0x20] sm:$0xff]
        %v232 = vld [vmem:[#allocation5 + $0x28] sm:$0xff]
        %v233 = vld [vmem:[#allocation5 + $0x30] sm:$0xff]
        %v234 = vld [vmem:[#allocation5 + $0x38] sm:$0xff]
        %v235 = vld [vmem:[#allocation5 + $0x40] sm:$0xff]
        %v236 = vld [vmem:[#allocation5 + $0x48] sm:$0xff]
        %v237 = vld [vmem:[#allocation5 + $0x50] sm:$0xff]
        %v238 = vld [vmem:[#allocation5 + $0x58] sm:$0xff]
        %v239 = vld [vmem:[#allocation5 + $0x60] sm:$0xff]
        %v240 = vld [vmem:[#allocation5 + $0x68] sm:$0xff]
        %v241 = vld [vmem:[#allocation5 + $0x70] sm:$0xff]
        %v242 = vld [vmem:[#allocation5 + $0x78] sm:$0xff]
        %v243 = vld [vmem:[#allocation5 + $0x80] sm:$0xff]
        %v244 = vld [vmem:[#allocation5 + $0x88] sm:$0xff]
        %v245 = vld [vmem:[#allocation5 + $0x90] sm:$0xff]
        %v246 = vld [vmem:[#allocation5 + $0x98] sm:$0xff]
        %v247 = vld [vmem:[#allocation5 + $0xa0] sm:$0xff]
        %v248 = vld [vmem:[#allocation5 + $0xa8] sm:$0xff]
        %v249 = vld [vmem:[#allocation5 + $0xb0] sm:$0xff]
        %v250 = vld [vmem:[#allocation5 + $0xb8] sm:$0xff]
        %v251 = vld [vmem:[#allocation5 + $0xc0] sm:$0xff]
        %v252 = vld [vmem:[#allocation5 + $0xc8] sm:$0xff]
        %v253 = vld [vmem:[#allocation5 + $0xd0] sm:$0xff]
        %v254 = vld [vmem:[#allocation5 + $0xd8] sm:$0xff]
        %v255 = vld [vmem:[#allocation5 + $0xe0] sm:$0xff]
        %v256 = vld [vmem:[#allocation5 + $0xe8] sm:$0xff]
        %v257 = vld [vmem:[#allocation5 + $0xf0] sm:$0xff]
        %v258 = vld [vmem:[#allocation5 + $0xf8] sm:$0xff]
        %v259 = vld [vmem:[#allocation5 + $0x100] sm:$0xff]
        %v260 = vld [vmem:[#allocation5 + $0x108] sm:$0xff]
        %v261 = vld [vmem:[#allocation5 + $0x110] sm:$0xff]
        %v262 = vld [vmem:[#allocation5 + $0x118] sm:$0xff]
        %v263 = vld [vmem:[#allocation5 + $0x120] sm:$0xff]
        %v264 = vld [vmem:[#allocation5 + $0x128] sm:$0xff]
        %v265 = vld [vmem:[#allocation5 + $0x130] sm:$0xff]
        %v266 = vld [vmem:[#allocation5 + $0x138] sm:$0xff]
        %v267 = vld [vmem:[#allocation5 + $0x140] sm:$0xff]
        %v268 = vld [vmem:[#allocation5 + $0x148] sm:$0xff]
        %v269 = vld [vmem:[#allocation5 + $0x150] sm:$0xff]
        %v270 = vld [vmem:[#allocation5 + $0x158] sm:$0xff]
        %v271 = vld [vmem:[#allocation5 + $0x160] sm:$0xff]
        %v272 = vld [vmem:[#allocation5 + $0x168] sm:$0xff]
        %v273 = vld [vmem:[#allocation5 + $0x170] sm:$0xff]
        %v274 = vld [vmem:[#allocation5 + $0x178] sm:$0xff]
        %v275 = vld [vmem:[#allocation5 + $0x180] sm:$0xff]
        %v276 = vld [vmem:[#allocation5 + $0x188] sm:$0xff]
        %v277 = vld [vmem:[#allocation5 + $0x190] sm:$0xff]
        %v278 = vld [vmem:[#allocation5 + $0x198] sm:$0xff]
        %v279 = vld [vmem:[#allocation5 + $0x1a0] sm:$0xff]
        %v280 = vld [vmem:[#allocation5 + $0x1a8] sm:$0xff]
        %v281 = vld [vmem:[#allocation5 + $0x1b0] sm:$0xff]
        %v282 = vld [vmem:[#allocation5 + $0x1b8] sm:$0xff]
        %v283 = vld [vmem:[#allocation5 + $0x1c0] sm:$0xff]
        %v284 = vld [vmem:[#allocation5 + $0x1c8] sm:$0xff]
        %v285 = vld [vmem:[#allocation5 + $0x1d0] sm:$0xff]
        %v286 = vld [vmem:[#allocation5 + $0x1d8] sm:$0xff]
        %v287 = vld [vmem:[#allocation5 + $0x1e0] sm:$0xff]
        %v288 = vld [vmem:[#allocation5 + $0x1e8] sm:$0xff]
        %v289 = vld [vmem:[#allocation5 + $0x1f0] sm:$0xff]
        %v290 = vld [vmem:[#allocation5 + $0x1f8] sm:$0xff]
        %291 = vmatprep.subr.mxu0 %v258
        %292 = vmatpush1.msra.mxu0 %v257
        %293 = vmatprep.subr.mxu0 %v256
        %294 = vmatpush1.msra.mxu0 %v255
        %295 = vmatprep.subr.mxu0 %v254
        %296 = vmatpush1.msra.mxu0 %v253
        %297 = vmatprep.subr.mxu0 %v252
        %298 = vmatpush1.msra.mxu0 %v251
        %299 = vmatprep.subr.mxu0 %v250
        %300 = vmatpush1.msra.mxu0 %v249
        %301 = vmatprep.subr.mxu0 %v248
        %302 = vmatpush1.msra.mxu0 %v247
        %303 = vmatprep.subr.mxu0 %v246
        %304 = vmatpush1.msra.mxu0 %v245
        %305 = vmatprep.subr.mxu0 %v244
        %306 = vmatpush1.msra.mxu0 %v243
        %307 = vmatprep.subr.mxu0 %v242
        %308 = vmatpush1.msra.mxu0 %v241
        %309 = vmatprep.subr.mxu0 %v240
        %310 = vmatpush1.msra.mxu0 %v239
        %311 = vmatprep.subr.mxu0 %v238
        %312 = vmatpush1.msra.mxu0 %v237
        %313 = vmatprep.subr.mxu0 %v236
        %314 = vmatpush1.msra.mxu0 %v235
        %315 = vmatprep.subr.mxu0 %v234
        %316 = vmatpush1.msra.mxu0 %v233
        %317 = vmatprep.subr.mxu0 %v232
        %318 = vmatpush1.msra.mxu0 %v231
        %319 = vmatprep.subr.mxu0 %v230
        %320 = vmatpush1.msra.mxu0 %v229
        %321 = vmatprep.subr.mxu0 %v228
        %322 = vmatpush1.msra.mxu0 %v227
        %323 = vmatprep.subr.mxu0 %v290
        %324 = vmatpush2.msra.mxu0 %v289
        %325 = vmatprep.subr.mxu0 %v288
        %326 = vmatpush2.msra.mxu0 %v287
        %327 = vmatprep.subr.mxu0 %v286
        %328 = vmatpush2.msra.mxu0 %v285
        %329 = vmatprep.subr.mxu0 %v284
        %330 = vmatpush2.msra.mxu0 %v283
        %331 = vmatprep.subr.mxu0 %v282
        %332 = vmatpush2.msra.mxu0 %v281
        %333 = vmatprep.subr.mxu0 %v280
        %334 = vmatpush2.msra.mxu0 %v279
        %335 = vmatprep.subr.mxu0 %v278
        %336 = vmatpush2.msra.mxu0 %v277
        %337 = vmatprep.subr.mxu0 %v276
        %338 = vmatpush2.msra.mxu0 %v275
        %339 = vmatprep.subr.mxu0 %v274
        %340 = vmatpush2.msra.mxu0 %v273
        %341 = vmatprep.subr.mxu0 %v272
        %342 = vmatpush2.msra.mxu0 %v271
        %343 = vmatprep.subr.mxu0 %v270
        %344 = vmatpush2.msra.mxu0 %v269
        %345 = vmatprep.subr.mxu0 %v268
        %346 = vmatpush2.msra.mxu0 %v267
        %347 = vmatprep.subr.mxu0 %v266
        %348 = vmatpush2.msra.mxu0 %v265
        %349 = vmatprep.subr.mxu0 %v264
        %350 = vmatpush2.msra.mxu0 %v263
        %351 = vmatprep.subr.mxu0 %v262
        %352 = vmatpush2.msra.mxu0 %v261
        %353 = vmatprep.subr.mxu0 %v260
        %354 = vmatpush2.msra.mxu0 %v259
        %355 = vmatprep.mubr.f32.mxu0 %v222
        %356 = vmatmul.mubr.f32.gmra.mxu0 %v221
        %v357 = vpop.f32.mrf.mxu0
        %v358 = vadd.f32 0.0, %v357
        %v359 = vpop.f32.mrf.mxu0
        %v360 = vadd.f32 0.0, %v359
        %361 = vmatprep.mubr.f32.mxu0 %v224
        %362 = vmatmul.mubr.f32.gmra.mxu0 %v223
        %v363 = vpop.f32.mrf.mxu0
        %v364 = vadd.f32 0.0, %v363
        %v365 = vpop.f32.mrf.mxu0
        %v366 = vadd.f32 0.0, %v365
        %367 = vmatprep.mubr.f32.mxu0 %v226
        %368 = vmatmul.mubr.f32.gmra.mxu0 %v225
        %v369 = vpop.f32.mrf.mxu0
        %v370 = vadd.f32 0.0, %v369
        %v371 = vpop.f32.mrf.mxu0
        %v372 = vadd.f32 0.0, %v371
        %373 = vdwg.mxu0
        %v374 = vmul.f32 %v358, %v358
        %v375 = vmul.f32 %v364, %v364
        %v376 = vmul.f32 %v370, %v370
        %v377 = vmul.f32 %v360, %v360
        %v378 = vmul.f32 %v366, %v366
        %v379 = vmul.f32 %v372, %v372
        %v380 = vadd.f32 %v374, %v377
        %v381 = vadd.f32 %v375, %v378
        %v382 = vadd.f32 %v376, %v379
        %v383 = vmax.f32 %v380, 1e-10
        %v384 = vmax.f32 %v381, 1e-10
        %v385 = vmax.f32 %v382, 1e-10
        %v386 = vrsqrt.pop %v383
        %v387 = vmul.f32 %v383, %v386
        %vm388 = vcmp.eq.f32.partialorder %v383, inf
        %v389 = vsel %vm388, %v383, %v387
        %vm390 = vcmp.eq.f32.partialorder %v383, 0.0
        %v391 = vand.u32 %v383, 2147483648
        %v392 = vsel %vm390, %v391, %v389
        %v393 = vrsqrt.pop %v384
        %v394 = vmul.f32 %v384, %v393
        %vm395 = vcmp.eq.f32.partialorder %v384, inf
        %v396 = vsel %vm395, %v384, %v394
        %vm397 = vcmp.eq.f32.partialorder %v384, 0.0
        %v398 = vand.u32 %v384, 2147483648
        %v399 = vsel %vm397, %v398, %v396
        %v400 = vrsqrt.pop %v385
        %v401 = vmul.f32 %v385, %v400
        %vm402 = vcmp.eq.f32.partialorder %v385, inf
        %v403 = vsel %vm402, %v385, %v401
        %vm404 = vcmp.eq.f32.partialorder %v385, 0.0
        %v405 = vand.u32 %v385, 2147483648
        %v406 = vsel %vm404, %v405, %v403
        %v407 = vld [vmem:[#allocation7] sm:$0xff]
        %v408 = vld [vmem:[#allocation7 + $0x8] sm:$0xff]
        %v409 = vld [vmem:[#allocation7 + $0x10] sm:$0xff]
        %v410 = vld [vmem:[#allocation7 + $0x18] sm:$0xff]
        %v411 = vld [vmem:[#allocation7 + $0x20] sm:$0xff]
        %v412 = vld [vmem:[#allocation7 + $0x28] sm:$0xff]
        %v413 = vld [vmem:[#allocation7 + $0x30] sm:$0xff]
        %v414 = vld [vmem:[#allocation7 + $0x38] sm:$0xff]
        %v415 = vld [vmem:[#allocation7 + $0x40] sm:$0xff]
        %v416 = vld [vmem:[#allocation7 + $0x48] sm:$0xff]
        %v417 = vld [vmem:[#allocation7 + $0x50] sm:$0xff]
        %v418 = vld [vmem:[#allocation7 + $0x58] sm:$0xff]
        %v419 = vld [vmem:[#allocation7 + $0x60] sm:$0xff]
        %v420 = vld [vmem:[#allocation7 + $0x68] sm:$0xff]
        %v421 = vld [vmem:[#allocation7 + $0x70] sm:$0xff]
        %v422 = vld [vmem:[#allocation7 + $0x78] sm:$0xff]
        %423 = vmatprep.subr.mxu0 0.0
        %424 = vmatpush1.msra.mxu0 %v422
        %425 = vmatprep.subr.mxu0 0.0
        %426 = vmatpush1.msra.mxu0 %v421
        %427 = vmatprep.subr.mxu0 0.0
        %428 = vmatpush1.msra.mxu0 %v420
        %429 = vmatprep.subr.mxu0 0.0
        %430 = vmatpush1.msra.mxu0 %v419
        %431 = vmatprep.subr.mxu0 0.0
        %432 = vmatpush1.msra.mxu0 %v418
        %433 = vmatprep.subr.mxu0 0.0
        %434 = vmatpush1.msra.mxu0 %v417
        %435 = vmatprep.subr.mxu0 0.0
        %436 = vmatpush1.msra.mxu0 %v416
        %437 = vmatprep.subr.mxu0 0.0
        %438 = vmatpush1.msra.mxu0 %v415
        %439 = vmatprep.subr.mxu0 0.0
        %440 = vmatpush1.msra.mxu0 %v414
        %441 = vmatprep.subr.mxu0 0.0
        %442 = vmatpush1.msra.mxu0 %v413
        %443 = vmatprep.subr.mxu0 0.0
        %444 = vmatpush1.msra.mxu0 %v412
        %445 = vmatprep.subr.mxu0 0.0
        %446 = vmatpush1.msra.mxu0 %v411
        %447 = vmatprep.subr.mxu0 0.0
        %448 = vmatpush1.msra.mxu0 %v410
        %449 = vmatprep.subr.mxu0 0.0
        %450 = vmatpush1.msra.mxu0 %v409
        %451 = vmatprep.subr.mxu0 0.0
        %452 = vmatpush1.msra.mxu0 %v408
        %453 = vmatprep.subr.mxu0 0.0
        %454 = vmatpush1.msra.mxu0 %v407
        %455 = vmatprep.subr.mxu0 0.0
        %456 = vmatpush2.msra.mxu0 0.0
        %457 = vmatprep.subr.mxu0 0.0
        %458 = vmatpush2.msra.mxu0 0.0
        %459 = vmatprep.subr.mxu0 0.0
        %460 = vmatpush2.msra.mxu0 0.0
        %461 = vmatprep.subr.mxu0 0.0
        %462 = vmatpush2.msra.mxu0 0.0
        %463 = vmatprep.subr.mxu0 0.0
        %464 = vmatpush2.msra.mxu0 0.0
        %465 = vmatprep.subr.mxu0 0.0
        %466 = vmatpush2.msra.mxu0 0.0
        %467 = vmatprep.subr.mxu0 0.0
        %468 = vmatpush2.msra.mxu0 0.0
        %469 = vmatprep.subr.mxu0 0.0
        %470 = vmatpush2.msra.mxu0 0.0
        %471 = vmatprep.subr.mxu0 0.0
        %472 = vmatpush2.msra.mxu0 0.0
        %473 = vmatprep.subr.mxu0 0.0
        %474 = vmatpush2.msra.mxu0 0.0
        %475 = vmatprep.subr.mxu0 0.0
        %476 = vmatpush2.msra.mxu0 0.0
        %477 = vmatprep.subr.mxu0 0.0
        %478 = vmatpush2.msra.mxu0 0.0
        %479 = vmatprep.subr.mxu0 0.0
        %480 = vmatpush2.msra.mxu0 0.0
        %481 = vmatprep.subr.mxu0 0.0
        %482 = vmatpush2.msra.mxu0 0.0
        %483 = vmatprep.subr.mxu0 0.0
        %484 = vmatpush2.msra.mxu0 0.0
        %485 = vmatprep.subr.mxu0 0.0
        %486 = vmatpush2.msra.mxu0 0.0
        %487 = vmatprep.mubr.f32.mxu0 0.0
        %488 = vmatmul.mubr.f32.gmra.mxu0 %v392
        %v489 = vpop.f32.mrf.mxu0
        %v490 = vadd.f32 0.0, %v489
        %v491 = vpop.f32.mrf.mxu0
        %492 = vmatprep.mubr.f32.mxu0 0.0
        %493 = vmatmul.mubr.f32.gmra.mxu0 %v399
        %v494 = vpop.f32.mrf.mxu0
        %v495 = vadd.f32 0.0, %v494
        %v496 = vpop.f32.mrf.mxu0
        %497 = vmatprep.mubr.f32.mxu0 0.0
        %498 = vmatmul.mubr.f32.gmra.mxu0 %v406
        %v499 = vpop.f32.mrf.mxu0
        %v500 = vadd.f32 0.0, %v499
        %v501 = vpop.f32.mrf.mxu0
        %502 = vdwg.mxu0
        %v503 = vmax.f32 %v490, 1e-10
        %v504 = vmax.f32 %v495, 1e-10
        %v505 = vmax.f32 %v500, 1e-10
        %v506 = vlog2.pop %v503
        %v507 = vmul.f32 %v506, 0.6931472
        %v508 = vlog2.pop %v504
        %v509 = vmul.f32 %v508, 0.6931472
        %v510 = vlog2.pop %v505
        %v511 = vmul.f32 %v510, 0.6931472
        %v512 = vmul.f32 %v507, 0.4342945
        %v513 = vmul.f32 %v509, 0.4342945
        %v514 = vmul.f32 %v511, 0.4342945
        %515 = vst [vmem:[%s218] sm:$0xff] %v512
        %516 = vst [vmem:[%s218 + $0x8] sm:$0xff] %v513
        %517 = vst [vmem:[%s218 + $0x10] sm:$0xff] %v514
        %s518 = sand.u32 %s97, 1
        %s519 = scalar_lea.sflag [#allocation4], %s518
        %s520 = sand.u32 %s97, 1
        %s521 = smul.addr %s520, 24
        %s522 = scalar_lea.vmem [#allocation8], %s521
        // Predicated region
        $region45: #{tpu_custom_call.1} parent=31 // pred_check
          %p523 = pneg %p107
        $region46: #{tpu_custom_call.1} parent=31 // pred_check_branch
          %525 = sbr.rel (%p523) target = $region48
        $region47: #{tpu_custom_call.1} parent=31 // pred_region
          %s526 = smul.u32 3, %s21
          %s528 = ssub.s32 384, 384
          %529 = vsyncadd %s519, %s528
          %s530 = smul.addr %s526, 128
          %s531 = scalar_lea.hbm %s3, %s530
          %s532 = sshll.u32 %s522, 4
          %s533 = int_to_ptr.vmem [resolvable:$true] %s532
          %538 = dma.vmem_to_hbm [thread:$0]  %s533, 384, %s531, %s519, 128, 128, 8
        $region48: #{tpu_custom_call.1} parent=31 // pred_fallthru
          _
      $region32: #{tpu_custom_call.1} parent=5 // pred_fallthru
        _
      %p539 = scmp.le.s32.totalorder 2, %s16
      // Predicated region
      $region49: #{tpu_custom_call.1} parent=5 // pred_check
        %p540 = pneg %p539
      $region50: #{tpu_custom_call.1} parent=5 // pred_check_branch
        %542 = sbr.rel (%p540) target = $region52
      $region51: #{tpu_custom_call.1} parent=5 // pred_region
        %s543 = ssub.s32 %s16, 2
        // Predicated region
        $region53: #{tpu_custom_call.1} parent=51 // pred_check
          %p544 = pneg %p113
        $region54: #{tpu_custom_call.1} parent=51 // pred_check_branch
          %546 = sbr.rel (%p544) target = $region56
        $region55: #{tpu_custom_call.1} parent=51 // pred_region
          %s547 = sand.u32 %s98, 1
          %s548 = scalar_lea.sflag [#allocation4], %s547
          %s549 = sand.u32 %s98, 1
          %s550 = smul.addr %s549, 24
          %s551 = scalar_lea.vmem [#allocation8], %s550
          %552 = dma.done %s548, 384
        $region56: #{tpu_custom_call.1} parent=51 // pred_fallthru
          _
      $region52: #{tpu_custom_call.1} parent=5 // pred_fallthru
        _
    $region6: #{tpu_custom_call.1} parent=1 // loop_footer
      %s20 = sadd.s32 1, %s16
    $region7: #{tpu_custom_call.1} parent=1 // loop_footer_branch
      %15 = sbr.rel target = $region3
    $region8: #{tpu_custom_call.1} parent=1 // loop_exit
      _
    %553 = vsyncpa [#allocation3], 1
    %s554 = scalar_lea.sflag [#allocation3], 1
    %555 = vsyncpa %s554, 1
    %556 = vsyncpa [#allocation6], 1
    %557 = vsyncpa [#allocation4], 1
    %s558 = scalar_lea.sflag [#allocation4], 1
    %559 = vsyncpa %s558, 1

</llo_original>
